<compile_context>
chip_gen: v7x
topology: tpu7x:2x2x1
jax: 0.10.0
libtpu: 0.0.40
codegen_flags: <defaults>
</compile_context>

<pallas_src>
import functools
import math

import jax
import jax.numpy as jnp
from jax import lax
from jax.experimental import pallas as pl
from jax.experimental.pallas import tpu as pltpu

C1 = 0.01 ** 2
C2 = 0.03 ** 2


def _ssim_kernel(x_ref, y_ref, o_ref, *, plane_h, plane_w):
    # Block layout: (rows, wp) with rows = groups * plane_h image rows and
    # wp = k * plane_w lanes (k planes packed side by side along lanes).
    rows, wp = o_ref.shape
    x = x_ref[...].astype(jnp.float32)
    y = y_ref[...].astype(jnp.float32)

    # ---- boundary masks: reduced-shape integer iota, broadcast exactly once
    r = lax.broadcasted_iota(jnp.int32, (rows, 1), 0)
    lr = lax.rem(r, plane_h)                       # local row inside a plane
    top = jnp.broadcast_to(lr == 0, (rows, wp))
    bot = jnp.broadcast_to(lr == plane_h - 1, (rows, wp))

    c = lax.broadcasted_iota(jnp.int32, (1, wp), 1)
    lc = lax.rem(c, plane_w)                       # local column inside a plane
    left = jnp.broadcast_to(lc == 0, (rows, wp))
    right = jnp.broadcast_to(lc == plane_w - 1, (rows, wp))

    # ---- separable 3x3 reflect-padded box *sum* (unnormalised, i.e. x9) ----
    def row_sum(a):
        up = pltpu.roll(a, shift=1, axis=0)          # a[i-1] (wraps at i == 0)
        dn = pltpu.roll(a, shift=rows - 1, axis=0)   # a[i+1] (wraps at end)
        # Wrapped rows (plane boundaries) are never selected.
        return a + jnp.where(top, dn, up) + jnp.where(bot, up, dn)

    def col_sum(a):
        lf = pltpu.roll(a, shift=1, axis=1)          # a[:, j-1] (wraps at j == 0)
        rt = pltpu.roll(a, shift=wp - 1, axis=1)     # a[:, j+1] (wraps at end)
        return a + jnp.where(left, rt, lf) + jnp.where(right, lf, rt)

    def pool9(a):          # 3x3 reflect-padded average pool, scaled by 9
        return col_sum(row_sum(a))

    sx = pool9(x)
    sy = pool9(y)
    sxx = pool9(x * x)
    syy = pool9(y * y)
    sxy = pool9(x * y)

    # ---- SSIM with the 1/9 pooling normalisation folded into the constants.
    # mu = s/9, sigma = (9*s2 - s^2)/81; the global 1/81^2 cancels in n/d.
    c1 = 81.0 * C1
    c2 = 81.0 * C2
    t = 2.0 * (sx * sy)                  # 2 * sx * sy
    u = sx * sx + sy * sy
    n = (t + c1) * (18.0 * sxy - t + c2)
    d = (u + c1) * (9.0 * (sxx + syy) - u + c2)

    inv_d = pl.reciprocal(d, approx=True)            # EUP slot (d > 0)
    inv_d = inv_d * (2.0 - d * inv_d)                 # one Newton step -> ~f32 accuracy
    res = jnp.clip((1.0 - n * inv_d) * 0.5, 0.0, 1.0)
    o_ref[...] = res.astype(o_ref.dtype)


def _vmem_params():
    """(live-VMEM budget for block sizing, vmem_limit_bytes) per generation."""
    try:
        vmem = int(pltpu.get_tpu_info().vmem_capacity_bytes)
    except Exception:
        vmem = 128 * 1024 * 1024
    if vmem <= 64 * 1024 * 1024:
        # v7x-class: 64 MiB per TensorCore -> keep headroom for DMA staging.
        return 16 * 1024 * 1024, 36 * 1024 * 1024
    # v5e / v6e: 128 MiB -> larger blocks to amortise per-step overhead.
    return 48 * 1024 * 1024, 80 * 1024 * 1024


def _pack_factor(P, W):
    """How many planes to pack along lanes so rows are lane-dense (>=128)."""
    if W >= 128:
        return 1
    k0 = 128 // math.gcd(W, 128)        # smallest k with (k * W) % 128 == 0
    best = 1
    for k in range(1, P + 1):
        if P % k:
            continue
        if k % k0 == 0:
            return k                    # smallest lane-dense packing
        if k * W <= 256:
            best = k                    # otherwise: best partial lane fill
    return best


def _pick_block_groups(G, H, Wp, budget):
    """Number of plane-groups folded into one grid block."""
    # Rough live-VMEM model: ~18 f32 plane-group buffers in flight
    # (double-buffered I/O + pooled temporaries + masks).
    per_group = 18 * H * Wp * 4
    max_bg = max(1, budget // per_group)
    cands = [b for b in range(1, G + 1)
             if G % b == 0 and b <= max_bg and ((b * H) % 8 == 0 or b == G)]
    if not cands:
        # TODO(synk): tile W with halo columns for huge planes whose H is not
        # a multiple of 8; for now fall back to a single full-extent block.
        return G
    cands.sort(reverse=True)
    best = cands[0]
    # Prefer an even, >=2 grid (v7x shards the "parallel" axis across 2 TCs),
    # but never shrink the block below half of the best candidate.
    for b in cands:
        if (G // b) % 2 == 0 and b * 2 >= best:
            return b
    # TODO(synk): odd plane counts could use a non-divisor block + tail block
    # for perfect v7x balance.
    return best


def ssim_pallas(x, y):
    """x, y: (N, C, H, W). Returns (N, C, H, W); matches the torch SSIM module."""
    N, C, H, W = x.shape
    assert H >= 2 and W >= 2, "ReflectionPad2d(1) requires H, W >= 2"
    P = N * C

    k = _pack_factor(P, W)              # planes packed along the lane axis
    G = P // k
    Wp = k * W

    if k > 1:
        def pack(a):
            return a.reshape(G, k, H, W).transpose(0, 2, 1, 3).reshape(G * H, Wp)
        xf, yf = pack(x), pack(y)
    else:
        xf = x.reshape(P * H, W)
        yf = y.reshape(P * H, W)

    budget, vmem_limit = _vmem_params()
    Bg = _pick_block_groups(G, H, Wp, budget)
    grid = (G // Bg,)
    blk = (Bg * H, Wp)

    out = pl.pallas_call(
        functools.partial(_ssim_kernel, plane_h=H, plane_w=W),
        out_shape=jax.ShapeDtypeStruct((G * H, Wp), x.dtype),
        grid=grid,
        in_specs=[
            pl.BlockSpec(blk, lambda i: (i, 0)),
            pl.BlockSpec(blk, lambda i: (i, 0)),
        ],
        out_specs=pl.BlockSpec(blk, lambda i: (i, 0)),
        compiler_params=pltpu.CompilerParams(
            dimension_semantics=("parallel",),
            vmem_limit_bytes=vmem_limit,
        ),
    )(xf, yf)

    if k > 1:
        out = out.reshape(G, H, k, W).transpose(0, 2, 1, 3)
    return out.reshape(N, C, H, W)


def ssim_ref(x, y):
    """Pure-JAX reference mirroring the PyTorch module exactly."""
    def pad(a):
        return jnp.pad(a, ((0, 0), (0, 0), (1, 1), (1, 1)), mode="reflect")

    def pool(a):
        n, c, hp, wp = a.shape
        h, w = hp - 2, wp - 2
        acc = jnp.zeros((n, c, h, w), a.dtype)
        for di in range(3):
            for dj in range(3):
                acc = acc + a[:, :, di:di + h, dj:dj + w]
        return acc / 9.0

    xp, yp = pad(x), pad(y)
    mu_x, mu_y = pool(xp), pool(yp)
    sigma_x = pool(xp * xp) - mu_x ** 2
    sigma_y = pool(yp * yp) - mu_y ** 2
    sigma_xy = pool(xp * yp) - mu_x * mu_y
    n = (2 * mu_x * mu_y + C1) * (2 * sigma_xy + C2)
    d = (mu_x ** 2 + mu_y ** 2 + C1) * (sigma_x + sigma_y + C2)
    return jnp.clip((1 - n / d) / 2, 0.0, 1.0)


if __name__ == "__main__":
    key = jax.random.PRNGKey(0)
    kx, ky = jax.random.split(key)
    N, C, H, W = 2, 4, 16, 16
    x = jax.random.uniform(kx, (N, C, H, W), dtype=jnp.float32)
    y = jax.random.uniform(ky, (N, C, H, W), dtype=jnp.float32)

    ssim_fn = jax.jit(ssim_pallas)
    out = jax.block_until_ready(ssim_fn(x, y))
    ref = jax.block_until_ready(ssim_ref(x, y))

    assert out.shape == (N, C, H, W), out.shape
    err = float(jnp.max(jnp.abs(out - ref)))
    assert err < 1e-4, err
    print("KERNEL_OK")
</pallas_src>

<mosaic_0001>
module attributes {stable_mosaic.version = 11 : i64} {
  func.func @_ssim_kernel(%arg0: i32, %arg1: memref<16x128xf32, #tpu.memory_space<vmem>>, %arg2: memref<16x128xf32, #tpu.memory_space<vmem>>, %arg3: memref<16x128xf32, #tpu.memory_space<vmem>>) attributes {dimension_semantics = [#tpu.dimension_semantics<parallel>], iteration_bounds = array<i64: 1>, scalar_prefetch = 0 : i64, scratch_operands = 0 : i64, tpu.core_type = #tpu.core_type<tc>, window_params = [{transform_indices = @transform_0, window_bounds = array<i64: 16, 128>}, {transform_indices = @transform_1, window_bounds = array<i64: 16, 128>}, {transform_indices = @transform_2, window_bounds = array<i64: 16, 128>}]} {
    %c0 = arith.constant 0 : index
    %c0_0 = arith.constant 0 : index
    %0 = vector.load %arg1[%c0, %c0_0] : memref<16x128xf32, #tpu.memory_space<vmem>>, vector<16x128xf32>
    %c0_1 = arith.constant 0 : index
    %c0_2 = arith.constant 0 : index
    %1 = vector.load %arg2[%c0_1, %c0_2] : memref<16x128xf32, #tpu.memory_space<vmem>>, vector<16x128xf32>
    %2 = tpu.iota {dimensions = array<i32: 0>} : vector<16x1xi32>
    %c16_i32 = arith.constant 16 : i32
    %3 = vector.broadcast %c16_i32 : i32 to vector<16x1xi32>
    %4 = arith.remsi %2, %3 : vector<16x1xi32>
    %c0_i32 = arith.constant 0 : i32
    %5 = vector.broadcast %c0_i32 : i32 to vector<16x1xi32>
    %6 = arith.cmpi eq, %4, %5 : vector<16x1xi32>
    %7 = vector.shape_cast %6 : vector<16x1xi1> to vector<16x1xi1>
    %8 = vector.broadcast %7 : vector<16x1xi1> to vector<16x128xi1>
    %c15_i32 = arith.constant 15 : i32
    %9 = vector.broadcast %c15_i32 : i32 to vector<16x1xi32>
    %10 = arith.cmpi eq, %4, %9 : vector<16x1xi32>
    %11 = vector.shape_cast %10 : vector<16x1xi1> to vector<16x1xi1>
    %12 = vector.broadcast %11 : vector<16x1xi1> to vector<16x128xi1>
    %13 = tpu.iota {dimensions = array<i32: 1>} : vector<1x128xi32>
    %c16_i32_3 = arith.constant 16 : i32
    %14 = vector.broadcast %c16_i32_3 : i32 to vector<1x128xi32>
    %15 = arith.remsi %13, %14 : vector<1x128xi32>
    %c0_i32_4 = arith.constant 0 : i32
    %16 = vector.broadcast %c0_i32_4 : i32 to vector<1x128xi32>
    %17 = arith.cmpi eq, %15, %16 : vector<1x128xi32>
    %18 = vector.shape_cast %17 : vector<1x128xi1> to vector<1x128xi1>
    %19 = vector.broadcast %18 : vector<1x128xi1> to vector<16x128xi1>
    %c15_i32_5 = arith.constant 15 : i32
    %20 = vector.broadcast %c15_i32_5 : i32 to vector<1x128xi32>
    %21 = arith.cmpi eq, %15, %20 : vector<1x128xi32>
    %22 = vector.shape_cast %21 : vector<1x128xi1> to vector<1x128xi1>
    %23 = vector.broadcast %22 : vector<1x128xi1> to vector<16x128xi1>
    %c1_i32 = arith.constant 1 : i32
    %24 = tpu.dynamic_rotate %0 by %c1_i32 dim 0 : vector<16x128xf32>, i32 -> vector<16x128xf32>
    %c15_i32_6 = arith.constant 15 : i32
    %25 = tpu.dynamic_rotate %0 by %c15_i32_6 dim 0 : vector<16x128xf32>, i32 -> vector<16x128xf32>
    %26 = arith.select %8, %25, %24 : vector<16x128xi1>, vector<16x128xf32>
    %27 = arith.addf %0, %26 : vector<16x128xf32>
    %28 = arith.select %12, %24, %25 : vector<16x128xi1>, vector<16x128xf32>
    %29 = arith.addf %27, %28 : vector<16x128xf32>
    %c1_i32_7 = arith.constant 1 : i32
    %30 = tpu.dynamic_rotate %29 by %c1_i32_7 dim 1 : vector<16x128xf32>, i32 -> vector<16x128xf32>
    %c127_i32 = arith.constant 127 : i32
    %31 = tpu.dynamic_rotate %29 by %c127_i32 dim 1 : vector<16x128xf32>, i32 -> vector<16x128xf32>
    %32 = arith.select %19, %31, %30 : vector<16x128xi1>, vector<16x128xf32>
    %33 = arith.addf %29, %32 : vector<16x128xf32>
    %34 = arith.select %23, %30, %31 : vector<16x128xi1>, vector<16x128xf32>
    %35 = arith.addf %33, %34 : vector<16x128xf32>
    %c1_i32_8 = arith.constant 1 : i32
    %36 = tpu.dynamic_rotate %1 by %c1_i32_8 dim 0 : vector<16x128xf32>, i32 -> vector<16x128xf32>
    %c15_i32_9 = arith.constant 15 : i32
    %37 = tpu.dynamic_rotate %1 by %c15_i32_9 dim 0 : vector<16x128xf32>, i32 -> vector<16x128xf32>
    %38 = arith.select %8, %37, %36 : vector<16x128xi1>, vector<16x128xf32>
    %39 = arith.addf %1, %38 : vector<16x128xf32>
    %40 = arith.select %12, %36, %37 : vector<16x128xi1>, vector<16x128xf32>
    %41 = arith.addf %39, %40 : vector<16x128xf32>
    %c1_i32_10 = arith.constant 1 : i32
    %42 = tpu.dynamic_rotate %41 by %c1_i32_10 dim 1 : vector<16x128xf32>, i32 -> vector<16x128xf32>
    %c127_i32_11 = arith.constant 127 : i32
    %43 = tpu.dynamic_rotate %41 by %c127_i32_11 dim 1 : vector<16x128xf32>, i32 -> vector<16x128xf32>
    %44 = arith.select %19, %43, %42 : vector<16x128xi1>, vector<16x128xf32>
    %45 = arith.addf %41, %44 : vector<16x128xf32>
    %46 = arith.select %23, %42, %43 : vector<16x128xi1>, vector<16x128xf32>
    %47 = arith.addf %45, %46 : vector<16x128xf32>
    %48 = arith.mulf %0, %0 : vector<16x128xf32>
    %c1_i32_12 = arith.constant 1 : i32
    %49 = tpu.dynamic_rotate %48 by %c1_i32_12 dim 0 : vector<16x128xf32>, i32 -> vector<16x128xf32>
    %c15_i32_13 = arith.constant 15 : i32
    %50 = tpu.dynamic_rotate %48 by %c15_i32_13 dim 0 : vector<16x128xf32>, i32 -> vector<16x128xf32>
    %51 = arith.select %8, %50, %49 : vector<16x128xi1>, vector<16x128xf32>
    %52 = arith.addf %48, %51 : vector<16x128xf32>
    %53 = arith.select %12, %49, %50 : vector<16x128xi1>, vector<16x128xf32>
    %54 = arith.addf %52, %53 : vector<16x128xf32>
    %c1_i32_14 = arith.constant 1 : i32
    %55 = tpu.dynamic_rotate %54 by %c1_i32_14 dim 1 : vector<16x128xf32>, i32 -> vector<16x128xf32>
    %c127_i32_15 = arith.constant 127 : i32
    %56 = tpu.dynamic_rotate %54 by %c127_i32_15 dim 1 : vector<16x128xf32>, i32 -> vector<16x128xf32>
    %57 = arith.select %19, %56, %55 : vector<16x128xi1>, vector<16x128xf32>
    %58 = arith.addf %54, %57 : vector<16x128xf32>
    %59 = arith.select %23, %55, %56 : vector<16x128xi1>, vector<16x128xf32>
    %60 = arith.addf %58, %59 : vector<16x128xf32>
    %61 = arith.mulf %1, %1 : vector<16x128xf32>
    %c1_i32_16 = arith.constant 1 : i32
    %62 = tpu.dynamic_rotate %61 by %c1_i32_16 dim 0 : vector<16x128xf32>, i32 -> vector<16x128xf32>
    %c15_i32_17 = arith.constant 15 : i32
    %63 = tpu.dynamic_rotate %61 by %c15_i32_17 dim 0 : vector<16x128xf32>, i32 -> vector<16x128xf32>
    %64 = arith.select %8, %63, %62 : vector<16x128xi1>, vector<16x128xf32>
    %65 = arith.addf %61, %64 : vector<16x128xf32>
    %66 = arith.select %12, %62, %63 : vector<16x128xi1>, vector<16x128xf32>
    %67 = arith.addf %65, %66 : vector<16x128xf32>
    %c1_i32_18 = arith.constant 1 : i32
    %68 = tpu.dynamic_rotate %67 by %c1_i32_18 dim 1 : vector<16x128xf32>, i32 -> vector<16x128xf32>
    %c127_i32_19 = arith.constant 127 : i32
    %69 = tpu.dynamic_rotate %67 by %c127_i32_19 dim 1 : vector<16x128xf32>, i32 -> vector<16x128xf32>
    %70 = arith.select %19, %69, %68 : vector<16x128xi1>, vector<16x128xf32>
    %71 = arith.addf %67, %70 : vector<16x128xf32>
    %72 = arith.select %23, %68, %69 : vector<16x128xi1>, vector<16x128xf32>
    %73 = arith.addf %71, %72 : vector<16x128xf32>
    %74 = arith.mulf %0, %1 : vector<16x128xf32>
    %c1_i32_20 = arith.constant 1 : i32
    %75 = tpu.dynamic_rotate %74 by %c1_i32_20 dim 0 : vector<16x128xf32>, i32 -> vector<16x128xf32>
    %c15_i32_21 = arith.constant 15 : i32
    %76 = tpu.dynamic_rotate %74 by %c15_i32_21 dim 0 : vector<16x128xf32>, i32 -> vector<16x128xf32>
    %77 = arith.select %8, %76, %75 : vector<16x128xi1>, vector<16x128xf32>
    %78 = arith.addf %74, %77 : vector<16x128xf32>
    %79 = arith.select %12, %75, %76 : vector<16x128xi1>, vector<16x128xf32>
    %80 = arith.addf %78, %79 : vector<16x128xf32>
    %c1_i32_22 = arith.constant 1 : i32
    %81 = tpu.dynamic_rotate %80 by %c1_i32_22 dim 1 : vector<16x128xf32>, i32 -> vector<16x128xf32>
    %c127_i32_23 = arith.constant 127 : i32
    %82 = tpu.dynamic_rotate %80 by %c127_i32_23 dim 1 : vector<16x128xf32>, i32 -> vector<16x128xf32>
    %83 = arith.select %19, %82, %81 : vector<16x128xi1>, vector<16x128xf32>
    %84 = arith.addf %80, %83 : vector<16x128xf32>
    %85 = arith.select %23, %81, %82 : vector<16x128xi1>, vector<16x128xf32>
    %86 = arith.addf %84, %85 : vector<16x128xf32>
    %87 = arith.mulf %35, %47 : vector<16x128xf32>
    %cst = arith.constant 2.000000e+00 : f32
    %88 = vector.broadcast %cst : f32 to vector<16x128xf32>
    %89 = arith.mulf %88, %87 : vector<16x128xf32>
    %90 = arith.mulf %35, %35 : vector<16x128xf32>
    %91 = arith.mulf %47, %47 : vector<16x128xf32>
    %92 = arith.addf %90, %91 : vector<16x128xf32>
    %cst_24 = arith.constant 8.100000e-03 : f32
    %93 = vector.broadcast %cst_24 : f32 to vector<16x128xf32>
    %94 = arith.addf %89, %93 : vector<16x128xf32>
    %cst_25 = arith.constant 1.800000e+01 : f32
    %95 = vector.broadcast %cst_25 : f32 to vector<16x128xf32>
    %96 = arith.mulf %95, %86 : vector<16x128xf32>
    %97 = arith.subf %96, %89 : vector<16x128xf32>
    %cst_26 = arith.constant 7.290000e-02 : f32
    %98 = vector.broadcast %cst_26 : f32 to vector<16x128xf32>
    %99 = arith.addf %97, %98 : vector<16x128xf32>
    %100 = arith.mulf %94, %99 : vector<16x128xf32>
    %cst_27 = arith.constant 8.100000e-03 : f32
    %101 = vector.broadcast %cst_27 : f32 to vector<16x128xf32>
    %102 = arith.addf %92, %101 : vector<16x128xf32>
    %103 = arith.addf %60, %73 : vector<16x128xf32>
    %cst_28 = arith.constant 9.000000e+00 : f32
    %104 = vector.broadcast %cst_28 : f32 to vector<16x128xf32>
    %105 = arith.mulf %104, %103 : vector<16x128xf32>
    %106 = arith.subf %105, %92 : vector<16x128xf32>
    %cst_29 = arith.constant 7.290000e-02 : f32
    %107 = vector.broadcast %cst_29 : f32 to vector<16x128xf32>
    %108 = arith.addf %106, %107 : vector<16x128xf32>
    %109 = arith.mulf %102, %108 : vector<16x128xf32>
    %110 = tpu.reciprocal %109 {approx = true} : vector<16x128xf32> -> vector<16x128xf32>
    %111 = arith.mulf %109, %110 : vector<16x128xf32>
    %cst_30 = arith.constant 2.000000e+00 : f32
    %112 = vector.broadcast %cst_30 : f32 to vector<16x128xf32>
    %113 = arith.subf %112, %111 : vector<16x128xf32>
    %114 = arith.mulf %110, %113 : vector<16x128xf32>
    %115 = arith.mulf %100, %114 : vector<16x128xf32>
    %cst_31 = arith.constant 1.000000e+00 : f32
    %116 = vector.broadcast %cst_31 : f32 to vector<16x128xf32>
    %117 = arith.subf %116, %115 : vector<16x128xf32>
    %cst_32 = arith.constant 5.000000e-01 : f32
    %118 = vector.broadcast %cst_32 : f32 to vector<16x128xf32>
    %119 = arith.mulf %117, %118 : vector<16x128xf32>
    %cst_33 = arith.constant 0.000000e+00 : f32
    %cst_34 = arith.constant 1.000000e+00 : f32
    %120 = vector.broadcast %cst_33 : f32 to vector<16x128xf32>
    %121 = arith.maximumf %120, %119 : vector<16x128xf32>
    %122 = vector.broadcast %cst_34 : f32 to vector<16x128xf32>
    %123 = arith.minimumf %122, %121 : vector<16x128xf32>
    %c0_35 = arith.constant 0 : index
    %c0_36 = arith.constant 0 : index
    %124 = vector.load %arg3[%c0_35, %c0_36] : memref<16x128xf32, #tpu.memory_space<vmem>>, vector<16x128xf32>
    tpu.vector_store %arg3[%c0_35, %c0_36], %123 {strides = array<i32>} : memref<16x128xf32, #tpu.memory_space<vmem>>, vector<16x128xf32>,
    return
  }
  func.func @transform_0(%arg0: i32) -> (i32, i32) {
    %c0_i32 = arith.constant 0 : i32
    %c0_i32_0 = arith.constant 0 : i32
    return %arg0, %c0_i32 : i32, i32
  }
  func.func @transform_1(%arg0: i32) -> (i32, i32) {
    %c0_i32 = arith.constant 0 : i32
    %c0_i32_0 = arith.constant 0 : i32
    return %arg0, %c0_i32 : i32, i32
  }
  func.func @transform_2(%arg0: i32) -> (i32, i32) {
    %c0_i32 = arith.constant 0 : i32
    %c0_i32_0 = arith.constant 0 : i32
    return %arg0, %c0_i32 : i32, i32
  }
}

</mosaic_0001>

<llo_original>
// kernel: ssim_pallas.1
$region0: #{ssim_pallas.1}
  #allocation0 [shape = 'u32[]', space=smem, size = 0x4, offset = 0x4, fixed_abs, tag = 'smem constant byte address 0x4 - core index']
  #allocation1 [shape = 'u32[144,128]{1,0:T(1,128)}', space=vmem, size = 0x12000, scoped, tag = 'internal scratch']
  %s0 = inlined_call_operand.hbm [shape: f32[16,128], index: 0, kind: input, shape index: {}]
  %s1 = inlined_call_operand.hbm [shape: f32[16,128], index: 1, kind: input, shape index: {}]
  %s2 = inlined_call_operand.hbm [shape: f32[16,128], index: 2, kind: output, shape index: {}]
  %s3 = sld [smem:[#allocation0]]
  $region26: #{ssim_pallas.1} parent=0
    _
  %s5 = ssub.s32 1, %s3
  %s6 = scalar_select 0, %s5, %s3
  $region1: #{ssim_pallas.1} parent=0
    #allocation2 [shape = 'u8[8192]{0}', space=vmem, size = 0x2000, scoped, tag = 'input window, operand 0, single buffered']
    #allocation3 [shape = 's32[1]{0}', space=sflag, size = 0x4, scoped, tag = 'scoped memory for ssim_pallas.1']
    #allocation4 [shape = 's32[1]{0}', space=sflag, size = 0x4, scoped, tag = 'scoped memory for ssim_pallas.1']
    #allocation5 [shape = 'u8[8192]{0}', space=vmem, size = 0x2000, scoped, tag = 'input window, operand 1, single buffered']
    #allocation6 [shape = 's32[1]{0}', space=sflag, size = 0x4, scoped, tag = 'scoped memory for ssim_pallas.1']
    #allocation7 [shape = 'u8[8192]{0}', space=vmem, size = 0x2000, scoped, tag = 'output window, operand 0, single buffered']
    %7 = vsyncpa [#allocation3], 0
    %8 = vsyncpa [#allocation6], 0
    %9 = vsyncpa [#allocation4], 0
    // Predicated region
    $region2: #{ssim_pallas.1} parent=1 // pred_check
      _
    $region3: #{ssim_pallas.1} parent=1 // pred_check_branch
      %11 = sbr.rel (0) target = $region5
    $region4: #{ssim_pallas.1} parent=1 // pred_region
      %s13 = ssub.s32 256, 256
      %14 = vsyncadd [#allocation3], %s13
      %s15 = sshll.u32 [#allocation2], 4
      %s16 = int_to_ptr.vmem [resolvable:$true] %s15
      %21 = dma.hbm_to_vmem [thread:$0]  %s0, 256, %s16, [#allocation3], 128, 128, 8
    $region5: #{ssim_pallas.1} parent=1 // pred_fallthru
      _
    // Predicated region
    $region6: #{ssim_pallas.1} parent=1 // pred_check
      _
    $region7: #{ssim_pallas.1} parent=1 // pred_check_branch
      %23 = sbr.rel (0) target = $region9
    $region8: #{ssim_pallas.1} parent=1 // pred_region
      %s25 = ssub.s32 256, 256
      %26 = vsyncadd [#allocation6], %s25
      %s27 = sshll.u32 [#allocation5], 4
      %s28 = int_to_ptr.vmem [resolvable:$true] %s27
      %33 = dma.hbm_to_vmem [thread:$0]  %s1, 256, %s28, [#allocation6], 128, 128, 8
    $region9: #{ssim_pallas.1} parent=1 // pred_fallthru
      _
    // Predicated region
    $region10: #{ssim_pallas.1} parent=1 // pred_check
      _
    $region11: #{ssim_pallas.1} parent=1 // pred_check_branch
      %35 = sbr.rel (0) target = $region13
    $region12: #{ssim_pallas.1} parent=1 // pred_region
      %36 = dma.done [#allocation3], 256
    $region13: #{ssim_pallas.1} parent=1 // pred_fallthru
      _
    // Predicated region
    $region14: #{ssim_pallas.1} parent=1 // pred_check
      _
    $region15: #{ssim_pallas.1} parent=1 // pred_check_branch
      %38 = sbr.rel (0) target = $region17
    $region16: #{ssim_pallas.1} parent=1 // pred_region
      %39 = dma.done [#allocation6], 256
    $region17: #{ssim_pallas.1} parent=1 // pred_fallthru
      _
    %v40 = vld [vmem:[#allocation2] sm:$0xff]
    %v41 = vld [vmem:[#allocation2 + $0x8] sm:$0xff]
    %v42 = vld [vmem:[#allocation5] sm:$0xff]
    %v43 = vld [vmem:[#allocation5 + $0x8] sm:$0xff]
    %v44 = vlaneseq
    %v45 = vshrl.u32 %v44, 7
    %v46 = vadd.s32 %v45, 8
    %vm47 = vcmp.lt.s32.totalorder %v45, 0
    %v48 = vsub.s32 0, %v45
    %v49 = vsel %vm47, %v48, %v45
    %v50 = vshrl.u32 %v49, 4
    %v51 = vand.u32 %v49, 15
    %v52 = vsub.s32 0, %v51
    %v53 = vsel %vm47, %v52, %v51
    %vm54 = vcmp.lt.s32.totalorder %v46, 0
    %v55 = vsub.s32 0, %v46
    %v56 = vsel %vm54, %v55, %v46
    %v57 = vshrl.u32 %v56, 4
    %v58 = vand.u32 %v56, 15
    %v59 = vsub.s32 0, %v58
    %v60 = vsel %vm54, %v59, %v58
    %vm61 = vcmp.eq.s32.totalorder %v53, 0
    %vm62 = vcmp.eq.s32.totalorder %v60, 0
    %v63 = vsel %vm61, 1, 0
    %v64 = vsel %vm62, 1, 0
    %vm65 = vcmp.eq.s32.totalorder %v63, 1
    %vm66 = vcmp.eq.s32.totalorder %v64, 1
    %vm67 = vcmp.eq.s32.totalorder %v53, 15
    %vm68 = vcmp.eq.s32.totalorder %v60, 15
    %v69 = vsel %vm67, 1, 0
    %v70 = vsel %vm68, 1, 0
    %vm71 = vcmp.eq.s32.totalorder %v69, 1
    %vm72 = vcmp.eq.s32.totalorder %v70, 1
    %v73 = vlaneseq
    %v74 = vand.u32 %v73, 127
    %vm75 = vcmp.lt.s32.totalorder %v74, 0
    %v76 = vsub.s32 0, %v74
    %v77 = vsel %vm75, %v76, %v74
    %v78 = vshrl.u32 %v77, 4
    %v79 = vand.u32 %v77, 15
    %v80 = vsub.s32 0, %v79
    %v81 = vsel %vm75, %v80, %v79
    %vm82 = vcmp.eq.s32.totalorder %v81, 0
    %v83 = vsel %vm82, 1, 0
    %vm84 = vcmp.eq.s32.totalorder %v83, 1
    %vm85 = vcmp.eq.s32.totalorder %v81, 15
    %v86 = vsel %vm85, 1, 0
    %vm87 = vcmp.eq.s32.totalorder %v86, 1
    %v88 = vrot.slane %v40, 7
    %v89 = vrot.slane %v41, 7
    %vm90 = vcmp.lt.s32.totalorder %v45, 1
    %v91 = vsel %vm90, %v88, %v89
    %v92 = vsel %vm90, %v89, %v88
    %v93 = vrot.slane %v40, 1
    %v94 = vrot.slane %v41, 1
    %vm95 = vcmp.lt.s32.totalorder %v45, 7
    %v96 = vsel %vm95, %v93, %v94
    %v97 = vsel %vm95, %v94, %v93
    %v98 = vsel %vm65, %v96, %v92
    %v99 = vsel %vm66, %v97, %v91
    %v100 = vadd.f32 %v40, %v98
    %v101 = vadd.f32 %v41, %v99
    %v102 = vsel %vm71, %v92, %v96
    %v103 = vsel %vm72, %v91, %v97
    %v104 = vadd.f32 %v100, %v102
    %v105 = vadd.f32 %v101, %v103
    %106 = vrot.lane.b32.xlu0 %v104, 1
    %v107 = vpop.permute.xlu0 %106
    %108 = vrot.lane.b32.xlu0 %v105, 1
    %v109 = vpop.permute.xlu0 %108
    %110 = vrot.lane.b32.xlu0 %v104, 127
    %v111 = vpop.permute.xlu0 %110
    %112 = vrot.lane.b32.xlu0 %v105, 127
    %v113 = vpop.permute.xlu0 %112
    %v114 = vsel %vm84, %v111, %v107
    %v115 = vsel %vm84, %v113, %v109
    %v116 = vadd.f32 %v104, %v114
    %v117 = vadd.f32 %v105, %v115
    %v118 = vsel %vm87, %v107, %v111
    %v119 = vsel %vm87, %v109, %v113
    %v120 = vadd.f32 %v116, %v118
    %v121 = vadd.f32 %v117, %v119
    %v122 = vrot.slane %v42, 7
    %v123 = vrot.slane %v43, 7
    %v124 = vsel %vm90, %v122, %v123
    %v125 = vsel %vm90, %v123, %v122
    %v126 = vrot.slane %v42, 1
    %v127 = vrot.slane %v43, 1
    %v128 = vsel %vm95, %v126, %v127
    %v129 = vsel %vm95, %v127, %v126
    %v130 = vsel %vm65, %v128, %v125
    %v131 = vsel %vm66, %v129, %v124
    %v132 = vadd.f32 %v42, %v130
    %v133 = vadd.f32 %v43, %v131
    %v134 = vsel %vm71, %v125, %v128
    %v135 = vsel %vm72, %v124, %v129
    %v136 = vadd.f32 %v132, %v134
    %v137 = vadd.f32 %v133, %v135
    %138 = vrot.lane.b32.xlu0 %v136, 1
    %v139 = vpop.permute.xlu0 %138
    %140 = vrot.lane.b32.xlu0 %v137, 1
    %v141 = vpop.permute.xlu0 %140
    %142 = vrot.lane.b32.xlu0 %v136, 127
    %v143 = vpop.permute.xlu0 %142
    %144 = vrot.lane.b32.xlu0 %v137, 127
    %v145 = vpop.permute.xlu0 %144
    %v146 = vsel %vm84, %v143, %v139
    %v147 = vsel %vm84, %v145, %v141
    %v148 = vadd.f32 %v136, %v146
    %v149 = vadd.f32 %v137, %v147
    %v150 = vsel %vm87, %v139, %v143
    %v151 = vsel %vm87, %v141, %v145
    %v152 = vadd.f32 %v148, %v150
    %v153 = vadd.f32 %v149, %v151
    %v154 = vmul.f32 %v40, %v40
    %v155 = vmul.f32 %v41, %v41
    %v156 = vrot.slane %v154, 7
    %v157 = vrot.slane %v155, 7
    %v158 = vsel %vm90, %v156, %v157
    %v159 = vsel %vm90, %v157, %v156
    %v160 = vrot.slane %v154, 1
    %v161 = vrot.slane %v155, 1
    %v162 = vsel %vm95, %v160, %v161
    %v163 = vsel %vm95, %v161, %v160
    %v164 = vsel %vm65, %v162, %v159
    %v165 = vsel %vm66, %v163, %v158
    %v166 = vadd.f32 %v154, %v164
    %v167 = vadd.f32 %v155, %v165
    %v168 = vsel %vm71, %v159, %v162
    %v169 = vsel %vm72, %v158, %v163
    %v170 = vadd.f32 %v166, %v168
    %v171 = vadd.f32 %v167, %v169
    %172 = vrot.lane.b32.xlu0 %v170, 1
    %v173 = vpop.permute.xlu0 %172
    %174 = vrot.lane.b32.xlu0 %v171, 1
    %v175 = vpop.permute.xlu0 %174
    %176 = vrot.lane.b32.xlu0 %v170, 127
    %v177 = vpop.permute.xlu0 %176
    %178 = vrot.lane.b32.xlu0 %v171, 127
    %v179 = vpop.permute.xlu0 %178
    %v180 = vsel %vm84, %v177, %v173
    %v181 = vsel %vm84, %v179, %v175
    %v182 = vadd.f32 %v170, %v180
    %v183 = vadd.f32 %v171, %v181
    %v184 = vsel %vm87, %v173, %v177
    %v185 = vsel %vm87, %v175, %v179
    %v186 = vadd.f32 %v182, %v184
    %v187 = vadd.f32 %v183, %v185
    %v188 = vmul.f32 %v42, %v42
    %v189 = vmul.f32 %v43, %v43
    %v190 = vrot.slane %v188, 7
    %v191 = vrot.slane %v189, 7
    %v192 = vsel %vm90, %v190, %v191
    %v193 = vsel %vm90, %v191, %v190
    %v194 = vrot.slane %v188, 1
    %v195 = vrot.slane %v189, 1
    %v196 = vsel %vm95, %v194, %v195
    %v197 = vsel %vm95, %v195, %v194
    %v198 = vsel %vm65, %v196, %v193
    %v199 = vsel %vm66, %v197, %v192
    %v200 = vadd.f32 %v188, %v198
    %v201 = vadd.f32 %v189, %v199
    %v202 = vsel %vm71, %v193, %v196
    %v203 = vsel %vm72, %v192, %v197
    %v204 = vadd.f32 %v200, %v202
    %v205 = vadd.f32 %v201, %v203
    %206 = vrot.lane.b32.xlu0 %v204, 1
    %v207 = vpop.permute.xlu0 %206
    %208 = vrot.lane.b32.xlu0 %v205, 1
    %v209 = vpop.permute.xlu0 %208
    %210 = vrot.lane.b32.xlu0 %v204, 127
    %v211 = vpop.permute.xlu0 %210
    %212 = vrot.lane.b32.xlu0 %v205, 127
    %v213 = vpop.permute.xlu0 %212
    %v214 = vsel %vm84, %v211, %v207
    %v215 = vsel %vm84, %v213, %v209
    %v216 = vadd.f32 %v204, %v214
    %v217 = vadd.f32 %v205, %v215
    %v218 = vsel %vm87, %v207, %v211
    %v219 = vsel %vm87, %v209, %v213
    %v220 = vadd.f32 %v216, %v218
    %v221 = vadd.f32 %v217, %v219
    %v222 = vmul.f32 %v40, %v42
    %v223 = vmul.f32 %v41, %v43
    %v224 = vrot.slane %v222, 7
    %v225 = vrot.slane %v223, 7
    %v226 = vsel %vm90, %v224, %v225
    %v227 = vsel %vm90, %v225, %v224
    %v228 = vrot.slane %v222, 1
    %v229 = vrot.slane %v223, 1
    %v230 = vsel %vm95, %v228, %v229
    %v231 = vsel %vm95, %v229, %v228
    %v232 = vsel %vm65, %v230, %v227
    %v233 = vsel %vm66, %v231, %v226
    %v234 = vadd.f32 %v222, %v232
    %v235 = vadd.f32 %v223, %v233
    %v236 = vsel %vm71, %v227, %v230
    %v237 = vsel %vm72, %v226, %v231
    %v238 = vadd.f32 %v234, %v236
    %v239 = vadd.f32 %v235, %v237
    %240 = vrot.lane.b32.xlu0 %v238, 1
    %v241 = vpop.permute.xlu0 %240
    %242 = vrot.lane.b32.xlu0 %v239, 1
    %v243 = vpop.permute.xlu0 %242
    %244 = vrot.lane.b32.xlu0 %v238, 127
    %v245 = vpop.permute.xlu0 %244
    %246 = vrot.lane.b32.xlu0 %v239, 127
    %v247 = vpop.permute.xlu0 %246
    %v248 = vsel %vm84, %v245, %v241
    %v249 = vsel %vm84, %v247, %v243
    %v250 = vadd.f32 %v238, %v248
    %v251 = vadd.f32 %v239, %v249
    %v252 = vsel %vm87, %v241, %v245
    %v253 = vsel %vm87, %v243, %v247
    %v254 = vadd.f32 %v250, %v252
    %v255 = vadd.f32 %v251, %v253
    %v256 = vmul.f32 %v120, %v152
    %v257 = vmul.f32 %v121, %v153
    %v258 = vmul.f32 %v256, 2.0
    %v259 = vmul.f32 %v257, 2.0
    %v260 = vmul.f32 %v120, %v120
    %v261 = vmul.f32 %v121, %v121
    %v262 = vmul.f32 %v152, %v152
    %v263 = vmul.f32 %v153, %v153
    %v264 = vadd.f32 %v260, %v262
    %v265 = vadd.f32 %v261, %v263
    %v266 = vadd.f32 %v258, 0.0081
    %v267 = vadd.f32 %v259, 0.0081
    %v268 = vmul.f32 %v254, 18.0
    %v269 = vmul.f32 %v255, 18.0
    %v270 = vsub.f32 %v268, %v258
    %v271 = vsub.f32 %v269, %v259
    %v272 = vadd.f32 %v270, 0.0729
    %v273 = vadd.f32 %v271, 0.0729
    %v274 = vmul.f32 %v266, %v272
    %v275 = vmul.f32 %v267, %v273
    %v276 = vadd.f32 %v264, 0.0081
    %v277 = vadd.f32 %v265, 0.0081
    %v278 = vadd.f32 %v186, %v220
    %v279 = vadd.f32 %v187, %v221
    %v280 = vmul.f32 %v278, 9.0
    %v281 = vmul.f32 %v279, 9.0
    %v282 = vsub.f32 %v280, %v264
    %v283 = vsub.f32 %v281, %v265
    %v284 = vadd.f32 %v282, 0.0729
    %v285 = vadd.f32 %v283, 0.0729
    %v286 = vmul.f32 %v276, %v284
    %v287 = vmul.f32 %v277, %v285
    %v288 = vrcp.pop %v286
    %v289 = vrcp.pop %v287
    %v290 = vmul.f32 %v286, %v288
    %v291 = vmul.f32 %v287, %v289
    %v292 = vsub.f32 2.0, %v290
    %v293 = vsub.f32 2.0, %v291
    %v294 = vmul.f32 %v288, %v292
    %v295 = vmul.f32 %v289, %v293
    %v296 = vmul.f32 %v274, %v294
    %v297 = vmul.f32 %v275, %v295
    %v298 = vsub.f32 1.0, %v296
    %v299 = vsub.f32 1.0, %v297
    %v300 = vmul.f32 %v298, 0.5
    %v301 = vmul.f32 %v299, 0.5
    %v302 = vmax.f32 %v300, 0.0
    %v303 = vmax.f32 %v301, 0.0
    %v304 = vmin.f32 %v302, 1.0
    %v305 = vmin.f32 %v303, 1.0
    %306 = vst [vmem:[#allocation7] sm:$0xff] %v304
    %307 = vst [vmem:[#allocation7 + $0x8] sm:$0xff] %v305
    // Predicated region
    $region18: #{ssim_pallas.1} parent=1 // pred_check
      _
    $region19: #{ssim_pallas.1} parent=1 // pred_check_branch
      %309 = sbr.rel (0) target = $region21
    $region20: #{ssim_pallas.1} parent=1 // pred_region
      %s311 = ssub.s32 256, 256
      %312 = vsyncadd [#allocation4], %s311
      %s313 = sshll.u32 [#allocation7], 4
      %s314 = int_to_ptr.vmem [resolvable:$true] %s313
      %319 = dma.vmem_to_hbm [thread:$0]  %s314, 256, %s2, [#allocation4], 128, 128, 8
    $region21: #{ssim_pallas.1} parent=1 // pred_fallthru
      _
    // Predicated region
    $region22: #{ssim_pallas.1} parent=1 // pred_check
      _
    $region23: #{ssim_pallas.1} parent=1 // pred_check_branch
      %321 = sbr.rel (0) target = $region25
    $region24: #{ssim_pallas.1} parent=1 // pred_region
      %322 = dma.done [#allocation4], 256
    $region25: #{ssim_pallas.1} parent=1 // pred_fallthru
      _
    %323 = vsyncpa [#allocation3], 1
    %324 = vsyncpa [#allocation6], 1
    %325 = vsyncpa [#allocation4], 1

</llo_original>
